<compile_context>
chip_gen: v7x
topology: tpu7x:2x2x1
jax: 0.10.0
libtpu: 0.0.40
codegen_flags: <defaults>
</compile_context>

<pallas_src>
import functools
import math

import jax
import jax.numpy as jnp
from jax import lax
from jax.experimental import pallas as pl
from jax.experimental.pallas import tpu as pltpu


def _round_up(x, m):
    return ((x + m - 1) // m) * m


def _transform_kernel(x_ref, w_ref, b_ref, g_ref, beta_ref, o_ref, *, eps, inv_h):
    # MXU matmul: operands stay in their storage dtype (bf16 preferred),
    # f32 accumulation.
    y = jnp.dot(x_ref[...], w_ref[...], preferred_element_type=jnp.float32)
    y = y + b_ref[...]                        # (1, H) f32 bias broadcast

    # Exact (erf-based) GELU, matching torch.nn.GELU() default.
    y = 0.5 * y * (1.0 + lax.erf(y * jnp.float32(1.0 / math.sqrt(2.0))))

    # LayerNorm statistics with a single pass over the hidden dim:
    #   var = E[y^2] - E[y]^2 (the two sums are independent -> no serialized
    #   mean -> center -> mean chain through the XLU).
    row_sum = jnp.sum(y, axis=-1, keepdims=True)
    row_sumsq = jnp.sum(y * y, axis=-1, keepdims=True)
    mean = row_sum * jnp.float32(inv_h)
    var = jnp.maximum(row_sumsq * jnp.float32(inv_h) - mean * mean, 0.0)
    inv = lax.rsqrt(var + jnp.float32(eps))

    normed = (y - mean) * (inv * g_ref[...]) + beta_ref[...]
    o_ref[...] = normed.astype(o_ref.dtype)


def bert_prediction_head_transform(
    x, w, b, gamma, beta, *, eps=1e-12, tm=256,
    compute_dtype=jnp.bfloat16, vmem_limit_bytes=64 * 1024 * 1024,
):
    """x: [N, H] rows; w: [H, H] laid out so that dense(x) = x @ w + b."""
    N, H = x.shape
    out_dtype = x.dtype

    # bf16 storage for the MXU operands (f32 accumulation inside the kernel).
    if compute_dtype is not None:
        x = x.astype(compute_dtype)
        w = w.astype(compute_dtype)

    # Epilogue parameters stay f32 and lane-dense.
    b = jnp.asarray(b, jnp.float32).reshape(1, H)
    gamma = jnp.asarray(gamma, jnp.float32).reshape(1, H)
    beta = jnp.asarray(beta, jnp.float32).reshape(1, H)

    # Row tile: as large as requested (MXU-friendly), but never beyond the
    # 8-aligned row count; pad rows instead of asserting divisibility.
    tm_eff = min(tm, _round_up(N, 8))
    n_pad = pl.cdiv(N, tm_eff) * tm_eff
    if n_pad != N:
        x = jnp.pad(x, ((0, n_pad - N), (0, 0)))

    kernel = functools.partial(_transform_kernel, eps=eps, inv_h=1.0 / H)
    out = pl.pallas_call(
        kernel,
        out_shape=jax.ShapeDtypeStruct((n_pad, H), out_dtype),
        grid_spec=pltpu.PrefetchScalarGridSpec(
            num_scalar_prefetch=0,
            grid=(n_pad // tm_eff,),
            in_specs=[
                pl.BlockSpec((tm_eff, H), lambda i: (i, 0)),  # activation rows
                pl.BlockSpec((H, H), lambda i: (0, 0)),       # dense weight (resident)
                pl.BlockSpec((1, H), lambda i: (0, 0)),       # dense bias
                pl.BlockSpec((1, H), lambda i: (0, 0)),       # LN gamma
                pl.BlockSpec((1, H), lambda i: (0, 0)),       # LN beta
            ],
            out_specs=pl.BlockSpec((tm_eff, H), lambda i: (i, 0)),
        ),
        compiler_params=pltpu.CompilerParams(
            dimension_semantics=("parallel",),
            vmem_limit_bytes=vmem_limit_bytes,
        ),
    )(x, w, b, gamma, beta)

    return out[:N] if n_pad != N else out


def reference(x, w, b, gamma, beta, eps=1e-12, compute_dtype=jnp.bfloat16):
    # Mirrors the kernel's compute path (same bf16 operand rounding, f32 math).
    if compute_dtype is not None:
        x = x.astype(compute_dtype)
        w = w.astype(compute_dtype)
    x = x.astype(jnp.float32)
    w = w.astype(jnp.float32)
    b = jnp.asarray(b, jnp.float32).reshape(1, -1)
    gamma = jnp.asarray(gamma, jnp.float32).reshape(1, -1)
    beta = jnp.asarray(beta, jnp.float32).reshape(1, -1)
    y = x @ w + b
    y = 0.5 * y * (1.0 + lax.erf(y / jnp.sqrt(2.0)))
    mean = jnp.mean(y, axis=-1, keepdims=True)
    var = jnp.mean((y - mean) ** 2, axis=-1, keepdims=True)
    return ((y - mean) * lax.rsqrt(var + eps)) * gamma + beta


if __name__ == "__main__":
    B, S, H = 2, 8, 128          # small BERT-like shapes: batch=2, seq=8, hidden=128
    eps = 1e-12

    key = jax.random.PRNGKey(0)
    k_x, k_w, k_b = jax.random.split(key, 3)

    hidden_states = jax.random.normal(k_x, (B, S, H), dtype=jnp.float32)

    # Deterministic parameter init (synthetic; mimics Linear + LayerNorm shapes).
    bound = 1.0 / math.sqrt(H)
    w = jax.random.uniform(k_w, (H, H), jnp.float32, -bound, bound)  # x @ w == Linear
    b = jax.random.uniform(k_b, (H,), jnp.float32, -bound, bound)
    gamma = jnp.ones((H,), jnp.float32)
    beta = jnp.zeros((H,), jnp.float32)

    x2d = hidden_states.reshape(B * S, H)
    out = bert_prediction_head_transform(x2d, w, b, gamma, beta, eps=eps)
    out = out.reshape(B, S, H)
    jax.block_until_ready(out)

    ref = reference(x2d, w, b, gamma, beta, eps=eps).reshape(B, S, H)
    assert jnp.allclose(out, ref, atol=2e-3, rtol=2e-3), "mismatch vs reference"

    print("KERNEL_OK")
</pallas_src>

<mosaic_0001>
module attributes {stable_mosaic.version = 11 : i64} {
  func.func @_transform_kernel(%arg0: i32, %arg1: memref<16x128xbf16, #tpu.memory_space<vmem>>, %arg2: memref<128x128xbf16, #tpu.memory_space<vmem>>, %arg3: memref<1x128xf32, #tpu.memory_space<vmem>>, %arg4: memref<1x128xf32, #tpu.memory_space<vmem>>, %arg5: memref<1x128xf32, #tpu.memory_space<vmem>>, %arg6: memref<16x128xf32, #tpu.memory_space<vmem>>) attributes {dimension_semantics = [#tpu.dimension_semantics<parallel>], iteration_bounds = array<i64: 1>, scalar_prefetch = 0 : i64, scratch_operands = 0 : i64, tpu.core_type = #tpu.core_type<tc>, window_params = [{transform_indices = @transform_0, window_bounds = array<i64: 16, 128>}, {pipeline_mode = #tpu.pipeline_mode<synchronous>, transform_indices = @transform_1, window_bounds = array<i64: 128, 128>}, {pipeline_mode = #tpu.pipeline_mode<synchronous>, transform_indices = @transform_2, window_bounds = array<i64: 1, 128>}, {pipeline_mode = #tpu.pipeline_mode<synchronous>, transform_indices = @transform_3, window_bounds = array<i64: 1, 128>}, {pipeline_mode = #tpu.pipeline_mode<synchronous>, transform_indices = @transform_4, window_bounds = array<i64: 1, 128>}, {transform_indices = @transform_5, window_bounds = array<i64: 16, 128>}]} {
    %c0 = arith.constant 0 : index
    %c0_0 = arith.constant 0 : index
    %0 = vector.load %arg1[%c0, %c0_0] : memref<16x128xbf16, #tpu.memory_space<vmem>>, vector<16x128xbf16>
    %c0_1 = arith.constant 0 : index
    %c0_2 = arith.constant 0 : index
    %1 = vector.load %arg2[%c0_1, %c0_2] : memref<128x128xbf16, #tpu.memory_space<vmem>>, vector<128x128xbf16>
    %cst = arith.constant dense<0.000000e+00> : vector<16x128xf32>
    %2 = tpu.matmul %0, %1, %cst {dimension_numbers = #tpu.dot_dimension_numbers<[1], [0], [0], [1], [0, 0, 1, 1], [], []>} : vector<16x128xbf16>, vector<128x128xbf16>, vector<16x128xf32> -> vector<16x128xf32>
    %c0_3 = arith.constant 0 : index
    %c0_4 = arith.constant 0 : index
    %3 = vector.load %arg3[%c0_3, %c0_4] : memref<1x128xf32, #tpu.memory_space<vmem>>, vector<1x128xf32>
    %4 = vector.broadcast %3 : vector<1x128xf32> to vector<16x128xf32>
    %5 = arith.addf %2, %4 : vector<16x128xf32>
    %cst_5 = arith.constant 5.000000e-01 : f32
    %6 = vector.broadcast %cst_5 : f32 to vector<16x128xf32>
    %7 = arith.mulf %6, %5 : vector<16x128xf32>
    %cst_6 = arith.constant 0.707106769 : f32
    %8 = vector.broadcast %cst_6 : f32 to vector<16x128xf32>
    %9 = arith.mulf %5, %8 : vector<16x128xf32>
    %10 = math.erf %9 : vector<16x128xf32>
    %cst_7 = arith.constant 1.000000e+00 : f32
    %11 = vector.broadcast %cst_7 : f32 to vector<16x128xf32>
    %12 = arith.addf %11, %10 : vector<16x128xf32>
    %13 = arith.mulf %7, %12 : vector<16x128xf32>
    %cst_8 = arith.constant dense<0.000000e+00> : vector<16xf32>
    %14 = vector.multi_reduction <add>, %13, %cst_8 [1] : vector<16x128xf32> to vector<16xf32>
    %15 = vector.shape_cast %14 : vector<16xf32> to vector<16x1xf32>
    %16 = arith.mulf %13, %13 : vector<16x128xf32>
    %cst_9 = arith.constant dense<0.000000e+00> : vector<16xf32>
    %17 = vector.multi_reduction <add>, %16, %cst_9 [1] : vector<16x128xf32> to vector<16xf32>
    %18 = vector.shape_cast %17 : vector<16xf32> to vector<16x1xf32>
    %cst_10 = arith.constant 7.812500e-03 : f32
    %19 = vector.broadcast %cst_10 : f32 to vector<16x1xf32>
    %20 = arith.mulf %15, %19 : vector<16x1xf32>
    %cst_11 = arith.constant 7.812500e-03 : f32
    %21 = vector.broadcast %cst_11 : f32 to vector<16x1xf32>
    %22 = arith.mulf %18, %21 : vector<16x1xf32>
    %23 = arith.mulf %20, %20 : vector<16x1xf32>
    %24 = arith.subf %22, %23 : vector<16x1xf32>
    %cst_12 = arith.constant 0.000000e+00 : f32
    %25 = vector.broadcast %cst_12 : f32 to vector<16x1xf32>
    %26 = arith.maximumf %24, %25 : vector<16x1xf32>
    %cst_13 = arith.constant 9.99999996E-13 : f32
    %27 = vector.broadcast %cst_13 : f32 to vector<16x1xf32>
    %28 = arith.addf %26, %27 : vector<16x1xf32>
    %29 = math.rsqrt %28 : vector<16x1xf32>
    %30 = vector.broadcast %20 : vector<16x1xf32> to vector<16x128xf32>
    %31 = arith.subf %13, %30 : vector<16x128xf32>
    %c0_14 = arith.constant 0 : index
    %c0_15 = arith.constant 0 : index
    %32 = vector.load %arg4[%c0_14, %c0_15] : memref<1x128xf32, #tpu.memory_space<vmem>>, vector<1x128xf32>
    %33 = vector.broadcast %29 : vector<16x1xf32> to vector<16x128xf32>
    %34 = vector.broadcast %32 : vector<1x128xf32> to vector<16x128xf32>
    %35 = arith.mulf %33, %34 : vector<16x128xf32>
    %36 = arith.mulf %31, %35 : vector<16x128xf32>
    %c0_16 = arith.constant 0 : index
    %c0_17 = arith.constant 0 : index
    %37 = vector.load %arg5[%c0_16, %c0_17] : memref<1x128xf32, #tpu.memory_space<vmem>>, vector<1x128xf32>
    %38 = vector.broadcast %37 : vector<1x128xf32> to vector<16x128xf32>
    %39 = arith.addf %36, %38 : vector<16x128xf32>
    %c0_18 = arith.constant 0 : index
    %c0_19 = arith.constant 0 : index
    %40 = vector.load %arg6[%c0_18, %c0_19] : memref<16x128xf32, #tpu.memory_space<vmem>>, vector<16x128xf32>
    tpu.vector_store %arg6[%c0_18, %c0_19], %39 {strides = array<i32>} : memref<16x128xf32, #tpu.memory_space<vmem>>, vector<16x128xf32>,
    return
  }
  func.func @transform_0(%arg0: i32) -> (i32, i32) {
    %c0_i32 = arith.constant 0 : i32
    %c0_i32_0 = arith.constant 0 : i32
    return %arg0, %c0_i32 : i32, i32
  }
  func.func @transform_1(%arg0: i32) -> (i32, i32) {
    %c0_i32 = arith.constant 0 : i32
    %c0_i32_0 = arith.constant 0 : i32
    %c0_i32_1 = arith.constant 0 : i32
    return %c0_i32, %c0_i32_0 : i32, i32
  }
  func.func @transform_2(%arg0: i32) -> (i32, i32) {
    %c0_i32 = arith.constant 0 : i32
    %c0_i32_0 = arith.constant 0 : i32
    %c0_i32_1 = arith.constant 0 : i32
    return %c0_i32, %c0_i32_0 : i32, i32
  }
  func.func @transform_3(%arg0: i32) -> (i32, i32) {
    %c0_i32 = arith.constant 0 : i32
    %c0_i32_0 = arith.constant 0 : i32
    %c0_i32_1 = arith.constant 0 : i32
    return %c0_i32, %c0_i32_0 : i32, i32
  }
  func.func @transform_4(%arg0: i32) -> (i32, i32) {
    %c0_i32 = arith.constant 0 : i32
    %c0_i32_0 = arith.constant 0 : i32
    %c0_i32_1 = arith.constant 0 : i32
    return %c0_i32, %c0_i32_0 : i32, i32
  }
  func.func @transform_5(%arg0: i32) -> (i32, i32) {
    %c0_i32 = arith.constant 0 : i32
    %c0_i32_0 = arith.constant 0 : i32
    return %arg0, %c0_i32 : i32, i32
  }
}

</mosaic_0001>

<llo_original>
// kernel: tpu_custom_call.1
$region0: #{tpu_custom_call.1}
  #allocation0 [shape = 'u32[]', space=smem, size = 0x4, offset = 0x4, fixed_abs, tag = 'smem constant byte address 0x4 - core index']
  #allocation1 [shape = 'u32[144,128]{1,0:T(1,128)}', space=vmem, size = 0x12000, scoped, tag = 'internal scratch']
  %s0 = inlined_call_operand.hbm [shape: bf16[16,128], index: 0, kind: input, shape index: {}]
  %s1 = inlined_call_operand.hbm [shape: bf16[128,128], index: 1, kind: input, shape index: {}]
  %s2 = inlined_call_operand.hbm [shape: f32[1,128], index: 2, kind: input, shape index: {}]
  %s3 = inlined_call_operand.hbm [shape: f32[1,128], index: 3, kind: input, shape index: {}]
  %s4 = inlined_call_operand.hbm [shape: f32[1,128], index: 4, kind: input, shape index: {}]
  %s5 = inlined_call_operand.hbm [shape: f32[16,128], index: 5, kind: output, shape index: {}]
  %s6 = sld [smem:[#allocation0]]
  $region50: #{tpu_custom_call.1} parent=0
    _
  %s8 = ssub.s32 1, %s6
  %s9 = scalar_select 0, %s8, %s6
  $region1: #{tpu_custom_call.1} parent=0
    #allocation2 [shape = 'u8[4096]{0}', space=vmem, size = 0x1000, scoped, tag = 'input window, operand 0, single buffered']
    #allocation3 [shape = 's32[1]{0}', space=sflag, size = 0x4, scoped, tag = 'scoped memory for tpu_custom_call.1']
    #allocation4 [shape = 's32[1]{0}', space=sflag, size = 0x4, scoped, tag = 'scoped memory for tpu_custom_call.1']
    #allocation5 [shape = 'u8[32768]{0}', space=vmem, size = 0x8000, scoped, tag = 'input window, operand 1, single buffered']
    #allocation6 [shape = 's32[1]{0}', space=sflag, size = 0x4, scoped, tag = 'scoped memory for tpu_custom_call.1']
    #allocation7 [shape = 'u8[512]{0}', space=vmem, size = 0x400, scoped, tag = 'input window, operand 2, single buffered']
    #allocation8 [shape = 'u8[512]{0}', space=vmem, size = 0x400, scoped, tag = 'input window, operand 3, single buffered']
    #allocation9 [shape = 's32[1]{0}', space=sflag, size = 0x4, scoped, tag = 'scoped memory for tpu_custom_call.1']
    #allocation10 [shape = 'u8[512]{0}', space=vmem, size = 0x400, scoped, tag = 'input window, operand 4, single buffered']
    #allocation11 [shape = 'u8[8192]{0}', space=vmem, size = 0x2000, scoped, tag = 'output window, operand 0, single buffered']
    %10 = vsyncpa [#allocation3], 0
    %11 = vsyncpa [#allocation6], 0
    %12 = vsyncpa [#allocation9], 0
    %13 = vsyncpa [#allocation4], 0
    // Predicated region
    $region2: #{tpu_custom_call.1} parent=1 // pred_check
      _
    $region3: #{tpu_custom_call.1} parent=1 // pred_check_branch
      %15 = sbr.rel (0) target = $region5
    $region4: #{tpu_custom_call.1} parent=1 // pred_region
      %s17 = ssub.s32 128, 128
      %18 = vsyncadd [#allocation3], %s17
      %s19 = sshll.u32 [#allocation2], 4
      %s20 = int_to_ptr.vmem [resolvable:$true] %s19
      %25 = dma.hbm_to_vmem [thread:$0]  %s0, 128, %s20, [#allocation3], 64, 64, 4
    $region5: #{tpu_custom_call.1} parent=1 // pred_fallthru
      _
    // Predicated region
    $region6: #{tpu_custom_call.1} parent=1 // pred_check
      _
    $region7: #{tpu_custom_call.1} parent=1 // pred_check_branch
      %27 = sbr.rel (0) target = $region9
    $region8: #{tpu_custom_call.1} parent=1 // pred_region
      %s29 = ssub.s32 1024, 1024
      %30 = vsyncadd [#allocation6], %s29
      %s31 = sshll.u32 [#allocation5], 4
      %s32 = int_to_ptr.vmem [resolvable:$true] %s31
      %37 = dma.hbm_to_vmem [thread:$0]  %s1, 1024, %s32, [#allocation6], 64, 64, 4
    $region9: #{tpu_custom_call.1} parent=1 // pred_fallthru
      _
    // Predicated region
    $region10: #{tpu_custom_call.1} parent=1 // pred_check
      _
    $region11: #{tpu_custom_call.1} parent=1 // pred_check_branch
      %39 = sbr.rel (0) target = $region13
    $region12: #{tpu_custom_call.1} parent=1 // pred_region
      %s41 = ssub.s32 16, 16
      %42 = vsyncadd [#allocation6], %s41
      %s44 = sshll.u32 [#allocation7], 4
      %s45 = int_to_ptr.vmem [resolvable:$true] %s44
      %47 = dma.hbm_to_vmem [thread:$0]  %s2, 16, %s45, [#allocation6]
    $region13: #{tpu_custom_call.1} parent=1 // pred_fallthru
      _
    // Predicated region
    $region14: #{tpu_custom_call.1} parent=1 // pred_check
      _
    $region15: #{tpu_custom_call.1} parent=1 // pred_check_branch
      %49 = sbr.rel (0) target = $region17
    $region16: #{tpu_custom_call.1} parent=1 // pred_region
      %s51 = ssub.s32 16, 16
      %52 = vsyncadd [#allocation9], %s51
      %s54 = sshll.u32 [#allocation8], 4
      %s55 = int_to_ptr.vmem [resolvable:$true] %s54
      %57 = dma.hbm_to_vmem [thread:$0]  %s3, 16, %s55, [#allocation9]
    $region17: #{tpu_custom_call.1} parent=1 // pred_fallthru
      _
    // Predicated region
    $region18: #{tpu_custom_call.1} parent=1 // pred_check
      _
    $region19: #{tpu_custom_call.1} parent=1 // pred_check_branch
      %59 = sbr.rel (0) target = $region21
    $region20: #{tpu_custom_call.1} parent=1 // pred_region
      %s61 = ssub.s32 16, 16
      %62 = vsyncadd [#allocation9], %s61
      %s64 = sshll.u32 [#allocation10], 4
      %s65 = int_to_ptr.vmem [resolvable:$true] %s64
      %67 = dma.hbm_to_vmem [thread:$0]  %s4, 16, %s65, [#allocation9]
    $region21: #{tpu_custom_call.1} parent=1 // pred_fallthru
      _
    // Predicated region
    $region22: #{tpu_custom_call.1} parent=1 // pred_check
      _
    $region23: #{tpu_custom_call.1} parent=1 // pred_check_branch
      %69 = sbr.rel (0) target = $region25
    $region24: #{tpu_custom_call.1} parent=1 // pred_region
      %70 = dma.done [#allocation3], 128
    $region25: #{tpu_custom_call.1} parent=1 // pred_fallthru
      _
    // Predicated region
    $region26: #{tpu_custom_call.1} parent=1 // pred_check
      _
    $region27: #{tpu_custom_call.1} parent=1 // pred_check_branch
      %72 = sbr.rel (0) target = $region29
    $region28: #{tpu_custom_call.1} parent=1 // pred_region
      %73 = dma.done [#allocation6], 1024
    $region29: #{tpu_custom_call.1} parent=1 // pred_fallthru
      _
    // Predicated region
    $region30: #{tpu_custom_call.1} parent=1 // pred_check
      _
    $region31: #{tpu_custom_call.1} parent=1 // pred_check_branch
      %75 = sbr.rel (0) target = $region33
    $region32: #{tpu_custom_call.1} parent=1 // pred_region
      %76 = dma.done [#allocation6], 16
    $region33: #{tpu_custom_call.1} parent=1 // pred_fallthru
      _
    // Predicated region
    $region34: #{tpu_custom_call.1} parent=1 // pred_check
      _
    $region35: #{tpu_custom_call.1} parent=1 // pred_check_branch
      %78 = sbr.rel (0) target = $region37
    $region36: #{tpu_custom_call.1} parent=1 // pred_region
      %79 = dma.done [#allocation9], 16
    $region37: #{tpu_custom_call.1} parent=1 // pred_fallthru
      _
    // Predicated region
    $region38: #{tpu_custom_call.1} parent=1 // pred_check
      _
    $region39: #{tpu_custom_call.1} parent=1 // pred_check_branch
      %81 = sbr.rel (0) target = $region41
    $region40: #{tpu_custom_call.1} parent=1 // pred_region
      %82 = dma.done [#allocation9], 16
    $region41: #{tpu_custom_call.1} parent=1 // pred_fallthru
      _
    %v84 = vld [vmem:[#allocation2] sm:$0xf]
    %v85 = vld [vmem:[#allocation2 + $0x4] sm:$0xf]
    %v86 = vld [vmem:[#allocation5] sm:$0xf]
    %v87 = vld [vmem:[#allocation5 + $0x4] sm:$0xf]
    %v88 = vld [vmem:[#allocation5 + $0x8] sm:$0xf]
    %v89 = vld [vmem:[#allocation5 + $0xc] sm:$0xf]
    %v90 = vld [vmem:[#allocation5 + $0x10] sm:$0xf]
    %v91 = vld [vmem:[#allocation5 + $0x14] sm:$0xf]
    %v92 = vld [vmem:[#allocation5 + $0x18] sm:$0xf]
    %v93 = vld [vmem:[#allocation5 + $0x1c] sm:$0xf]
    %v94 = vld [vmem:[#allocation5 + $0x20] sm:$0xf]
    %v95 = vld [vmem:[#allocation5 + $0x24] sm:$0xf]
    %v96 = vld [vmem:[#allocation5 + $0x28] sm:$0xf]
    %v97 = vld [vmem:[#allocation5 + $0x2c] sm:$0xf]
    %v98 = vld [vmem:[#allocation5 + $0x30] sm:$0xf]
    %v99 = vld [vmem:[#allocation5 + $0x34] sm:$0xf]
    %v100 = vld [vmem:[#allocation5 + $0x38] sm:$0xf]
    %v101 = vld [vmem:[#allocation5 + $0x3c] sm:$0xf]
    %v102 = vld [vmem:[#allocation7] sm:$0x1]
    %v104 = vlaneseq
    %v105 = vshrl.u32 %v104, 7
    %v106 = vsub.s32 0, %v105
    %v107 = vrot.slane %v102, %v106
    %v111 = vunpack.c.l.b16 %v84
    %v112 = vunpack.c.l.b16 %v85
    %v113 = vpack.c.b16 %v112, %v111
    %v131 = vunpack.c.l.b16 %v86
    %v132 = vunpack.c.l.b16 %v87
    %v133 = vunpack.c.l.b16 %v88
    %v134 = vunpack.c.l.b16 %v89
    %v135 = vunpack.c.l.b16 %v90
    %v136 = vunpack.c.l.b16 %v91
    %v137 = vunpack.c.l.b16 %v92
    %v138 = vunpack.c.l.b16 %v93
    %v139 = vunpack.c.l.b16 %v94
    %v140 = vunpack.c.l.b16 %v95
    %v141 = vunpack.c.l.b16 %v96
    %v142 = vunpack.c.l.b16 %v97
    %v143 = vunpack.c.l.b16 %v98
    %v144 = vunpack.c.l.b16 %v99
    %v145 = vunpack.c.l.b16 %v100
    %v146 = vunpack.c.l.b16 %v101
    %v147 = vpack.c.b16 %v132, %v131
    %v148 = vpack.c.b16 %v134, %v133
    %v149 = vpack.c.b16 %v136, %v135
    %v150 = vpack.c.b16 %v138, %v137
    %v151 = vpack.c.b16 %v140, %v139
    %v152 = vpack.c.b16 %v142, %v141
    %v153 = vpack.c.b16 %v144, %v143
    %v154 = vpack.c.b16 %v146, %v145
    %163 = vmatprep.subr.bf16.mxu0 0
    %164 = vmatpush1.bf16.msra.mxu0 %v147
    %165 = vmatprep.subr.bf16.mxu0 0
    %166 = vmatpush1.bf16.msra.mxu0 %v148
    %167 = vmatprep.subr.bf16.mxu0 0
    %168 = vmatpush1.bf16.msra.mxu0 %v149
    %169 = vmatprep.subr.bf16.mxu0 0
    %170 = vmatpush1.bf16.msra.mxu0 %v150
    %171 = vmatprep.subr.bf16.mxu0 0
    %172 = vmatpush1.bf16.msra.mxu0 %v151
    %173 = vmatprep.subr.bf16.mxu0 0
    %174 = vmatpush1.bf16.msra.mxu0 %v152
    %175 = vmatprep.subr.bf16.mxu0 0
    %176 = vmatpush1.bf16.msra.mxu0 %v153
    %177 = vmatprep.subr.bf16.mxu0 0
    %178 = vmatpush1.bf16.msra.mxu0 %v154
    %179 = vmatprep.subr.bf16.mxu0 0
    %180 = vmatpush1.bf16.msra.mxu0 0
    %181 = vmatprep.subr.bf16.mxu0 0
    %182 = vmatpush1.bf16.msra.mxu0 0
    %183 = vmatprep.subr.bf16.mxu0 0
    %184 = vmatpush1.bf16.msra.mxu0 0
    %185 = vmatprep.subr.bf16.mxu0 0
    %186 = vmatpush1.bf16.msra.mxu0 0
    %187 = vmatprep.subr.bf16.mxu0 0
    %188 = vmatpush1.bf16.msra.mxu0 0
    %189 = vmatprep.subr.bf16.mxu0 0
    %190 = vmatpush1.bf16.msra.mxu0 0
    %191 = vmatprep.subr.bf16.mxu0 0
    %192 = vmatpush1.bf16.msra.mxu0 0
    %193 = vmatprep.subr.bf16.mxu0 0
    %194 = vmatpush1.bf16.msra.mxu0 0
    %195 = vmatprep.mubr.bf16.mxu0 0
    %196 = vmatmul.mubr.bf16.gmra.mrb[0].mxu0 %v113
    %v197 = vpop.f32.mrb[0].mxu0
    %v198 = vadd.f32 %v107, %v197
    %v199 = vpop.f32.mrb[0].mxu0
    %v200 = vpop.f32.mrb[0].mxu0
    %v201 = vadd.f32 %v107, %v200
    %v202 = vpop.f32.mrb[0].mxu0
    %203 = vdwg.mxu0
    %v204 = vmul.f32 %v198, 0.5
    %v205 = vmul.f32 %v201, 0.5
    %v206 = vmul.f32 %v198, 0.70710677
    %v207 = vmul.f32 %v201, 0.70710677
    %v208 = verf.f32.pop %v206
    %v209 = verf.f32.pop %v207
    %v210 = vadd.f32 %v208, 1.0
    %v211 = vadd.f32 %v209, 1.0
    %v212 = vmul.f32 %v204, %v210
    %v213 = vmul.f32 %v205, %v211
    %214 = vadd.xlane.f32.xlu0 %v212
    %v215 = vpop.xlane.xlu0 %214
    %216 = vadd.xlane.f32.xlu0 %v213
    %v217 = vpop.xlane.xlu0 %216
    %v218 = vmul.f32 %v212, %v212
    %v219 = vmul.f32 %v213, %v213
    %220 = vadd.xlane.f32.xlu0 %v218
    %v221 = vpop.xlane.xlu0 %220
    %222 = vadd.xlane.f32.xlu0 %v219
    %v223 = vpop.xlane.xlu0 %222
    %v224 = vmul.f32 %v215, 0.0078125
    %v225 = vmul.f32 %v217, 0.0078125
    %v226 = vmul.f32 %v221, 0.0078125
    %v227 = vmul.f32 %v223, 0.0078125
    %v228 = vmul.f32 %v224, %v224
    %v229 = vmul.f32 %v225, %v225
    %v230 = vsub.f32 %v226, %v228
    %v231 = vsub.f32 %v227, %v229
    %v232 = vmax.f32 %v230, 0.0
    %v233 = vmax.f32 %v231, 0.0
    %v234 = vadd.f32 %v232, 1e-12
    %v235 = vadd.f32 %v233, 1e-12
    %v236 = vrsqrt.pop %v234
    %v237 = vrsqrt.pop %v235
    %v238 = vsub.f32 %v212, %v224
    %v239 = vsub.f32 %v213, %v225
    %v240 = vld [vmem:[#allocation8] sm:$0x1]
    %v242 = vlaneseq
    %v243 = vshrl.u32 %v242, 7
    %v244 = vsub.s32 0, %v243
    %v245 = vrot.slane %v240, %v244
    %v247 = vmul.f32 %v236, %v245
    %v248 = vmul.f32 %v237, %v245
    %v249 = vmul.f32 %v238, %v247
    %v250 = vmul.f32 %v239, %v248
    %v251 = vld [vmem:[#allocation10] sm:$0x1]
    %v253 = vlaneseq
    %v254 = vshrl.u32 %v253, 7
    %v255 = vsub.s32 0, %v254
    %v256 = vrot.slane %v251, %v255
    %v258 = vadd.f32 %v249, %v256
    %v259 = vadd.f32 %v250, %v256
    %260 = vst [vmem:[#allocation11] sm:$0xff] %v258
    %261 = vst [vmem:[#allocation11 + $0x8] sm:$0xff] %v259
    // Predicated region
    $region42: #{tpu_custom_call.1} parent=1 // pred_check
      _
    $region43: #{tpu_custom_call.1} parent=1 // pred_check_branch
      %263 = sbr.rel (0) target = $region45
    $region44: #{tpu_custom_call.1} parent=1 // pred_region
      %s265 = ssub.s32 256, 256
      %266 = vsyncadd [#allocation4], %s265
      %s267 = sshll.u32 [#allocation11], 4
      %s268 = int_to_ptr.vmem [resolvable:$true] %s267
      %273 = dma.vmem_to_hbm [thread:$0]  %s268, 256, %s5, [#allocation4], 128, 128, 8
    $region45: #{tpu_custom_call.1} parent=1 // pred_fallthru
      _
    // Predicated region
    $region46: #{tpu_custom_call.1} parent=1 // pred_check
      _
    $region47: #{tpu_custom_call.1} parent=1 // pred_check_branch
      %275 = sbr.rel (0) target = $region49
    $region48: #{tpu_custom_call.1} parent=1 // pred_region
      %276 = dma.done [#allocation4], 256
    $region49: #{tpu_custom_call.1} parent=1 // pred_fallthru
      _
    %277 = vsyncpa [#allocation3], 1
    %278 = vsyncpa [#allocation6], 1
    %279 = vsyncpa [#allocation9], 1
    %280 = vsyncpa [#allocation4], 1

</llo_original>
